<compile_context>
chip_gen: v6e
topology: v6e:2x2x1
jax: 0.10.0
libtpu: 0.0.40
codegen_flags: <defaults>
</compile_context>

<pallas_src>
import functools
import math

import jax
import jax.numpy as jnp
from jax.experimental import pallas as pl
from jax.experimental.pallas import tpu as pltpu


# ----------------------------------------------------------------------------
# Helpers
# ----------------------------------------------------------------------------
def _pick_tile(n, limit, align=8):
    """Largest divisor of n that is <= limit and either align-multiple or == n."""
    limit = max(1, min(limit, n))
    for c in range(limit, 0, -1):
        if n % c == 0 and (c % align == 0 or c == n):
            return c
    return n


def _vmem_budget_bytes():
    """~70% of physical VMEM; falls back to the smallest generation (v7x, 64 MiB)."""
    try:
        cap = getattr(pltpu.get_tpu_info(), "vmem_capacity_bytes", None) or 64 * 2**20
    except Exception:
        cap = 64 * 2**20
    return int(cap * 0.7)


def _attn_footprint_bytes(tq, Lk, D):
    kv = 2 * 2 * Lk * D * 2                     # K,V blocks (bf16), double-buffered
    q_o = 2 * tq * D * 2 + 2 * tq * D * 4       # q (bf16) + out (f32), double-buffered
    msk = 2 * tq * Lk                           # int8 mask, double-buffered
    tmp = 8 * tq * Lk * 4                       # scores/x/p + bisection temporaries
    return kv + q_o + msk + tmp


# ----------------------------------------------------------------------------
# Linear projection kernel: y = x @ W + b, tiled over rows and output columns.
# ----------------------------------------------------------------------------
def _linear_kernel(x_ref, w_ref, b_ref, o_ref):
    o_ref[...] = (
        jnp.dot(x_ref[...], w_ref[...], preferred_element_type=jnp.float32)
        + b_ref[...]
    ).astype(o_ref.dtype)


def linear(x2d, w, b, *, row_tile=512, col_tile=512, out_dtype=None):
    """x2d: (M, Din), w: (Din, Dout) (== torch weight.T), b: (Dout,)."""
    M, Din = x2d.shape
    Dout = w.shape[1]
    out_dtype = out_dtype or x2d.dtype
    tm = _pick_tile(M, row_tile, align=8)
    tn = _pick_tile(Dout, col_tile, align=128)
    return pl.pallas_call(
        _linear_kernel,
        out_shape=jax.ShapeDtypeStruct((M, Dout), out_dtype),
        grid=(M // tm, Dout // tn),
        in_specs=[
            pl.BlockSpec((tm, Din), lambda i, j: (i, 0)),
            pl.BlockSpec((Din, tn), lambda i, j: (0, j)),   # bounded weight block
            pl.BlockSpec((1, tn), lambda i, j: (0, j)),
        ],
        out_specs=pl.BlockSpec((tm, tn), lambda i, j: (i, j)),
        compiler_params=pltpu.CompilerParams(
            dimension_semantics=("parallel", "parallel")),
    )(x2d, w, b.reshape(1, Dout))


# ----------------------------------------------------------------------------
# entmax-1.5 along the last axis via tau-bisection (converged => exact entmax15).
# Pure VPU/EUP work, O(N * n_iter) per row; no O(N^2) cube, no scratch.
# ----------------------------------------------------------------------------
def _entmax15_bisect(scores, n_iter):
    n = scores.shape[-1]
    x = (scores - jnp.max(scores, axis=-1, keepdims=True)) * 0.5     # max(x) == 0
    tau_lo = jnp.full(scores.shape[:-1] + (1,), -1.0, jnp.float32)   # f(tau_lo) >= 0
    dm = jnp.full_like(tau_lo, 1.0 - n ** -0.5)                      # tau_hi - tau_lo

    def body(_, carry):
        tau_lo, dm = carry
        dm = dm * 0.5
        tau_m = tau_lo + dm
        pm = jnp.maximum(x - tau_m, 0.0)
        f_m = jnp.sum(pm * pm, axis=-1, keepdims=True) - 1.0
        return jnp.where(f_m >= 0.0, tau_m, tau_lo), dm

    tau_lo, _ = jax.lax.fori_loop(0, n_iter, body, (tau_lo, dm))
    p = jnp.maximum(x - tau_lo, 0.0)
    p = p * p
    return p * pl.reciprocal(jnp.sum(p, axis=-1, keepdims=True), approx=True)


# ----------------------------------------------------------------------------
# Attention kernel: one (batch, Lq-tile) block per grid step, all heads inside.
# q/k/v arrive in bf16 (B, L, D) layout; heads are static lane slices; per-head
# PV outputs are concatenated into one lane-dense (tq, D) f32 store.
# ----------------------------------------------------------------------------
def _attn_kernel(q_ref, k_ref, v_ref, m_ref, o_ref, *, heads, n_iter):
    D = q_ref.shape[-1]
    hd = D // heads
    scale = 1.0 / math.sqrt(hd)
    masked = m_ref[0, :, :] == 0                         # (tq, Lk) bool

    outs = []
    for h in range(heads):
        sl = slice(h * hd, (h + 1) * hd)
        qh = q_ref[0, :, sl]                             # bf16 (tq, hd)
        kh = k_ref[0, :, sl]                             # bf16 (Lk, hd)
        vh = v_ref[0, :, sl]                             # bf16 (Lk, hd)
        # q @ k^T on the MXU, f32 accumulation; masking/normalization stay f32.
        scores = jax.lax.dot_general(
            qh, kh, (((1,), (1,)), ((), ())),
            preferred_element_type=jnp.float32) * scale  # (tq, Lk) f32
        scores = jnp.where(masked, jnp.float32(-1e12), scores)
        p = _entmax15_bisect(scores, n_iter)             # (tq, Lk) f32
        outs.append(jnp.dot(p.astype(jnp.bfloat16), vh,
                            preferred_element_type=jnp.float32))
    o_ref[0, :, :] = jnp.concatenate(outs, axis=-1).astype(o_ref.dtype)


def attention(qp, kp, vp, mask3, heads, *, q_tile=256, n_iter=32):
    """qp: (B, Lq, D) bf16, kp/vp: (B, Lk, D) bf16, mask3: (Bm, Lq, Lk) int8."""
    B, Lq, D = qp.shape
    Lk = kp.shape[1]
    Bm = mask3.shape[0]
    assert Bm in (1, B)

    budget = _vmem_budget_bytes()
    tq = _pick_tile(Lq, q_tile, align=8)
    while tq > 8 and _attn_footprint_bytes(tq, Lk, D) > budget:
        new_tq = _pick_tile(Lq, tq // 2, align=8)
        if new_tq >= tq:
            break
        tq = new_tq
    vmem_limit = int(min(max(1.2 * _attn_footprint_bytes(tq, Lk, D), 32 * 2**20),
                         budget + 8 * 2**20))

    mask_map = (lambda b, i: (b, i, 0)) if Bm == B else (lambda b, i: (0, i, 0))
    kernel = functools.partial(_attn_kernel, heads=heads, n_iter=n_iter)
    return pl.pallas_call(
        kernel,
        out_shape=jax.ShapeDtypeStruct((B, Lq, D), jnp.float32),
        grid=(B, Lq // tq),
        in_specs=[
            pl.BlockSpec((1, tq, D), lambda b, i: (b, i, 0)),
            pl.BlockSpec((1, Lk, D), lambda b, i: (b, 0, 0)),   # resident per batch
            pl.BlockSpec((1, Lk, D), lambda b, i: (b, 0, 0)),
            pl.BlockSpec((1, tq, Lk), mask_map),                # int8, no B-broadcast
        ],
        out_specs=pl.BlockSpec((1, tq, D), lambda b, i: (b, i, 0)),
        compiler_params=pltpu.CompilerParams(
            dimension_semantics=("parallel", "parallel"),
            vmem_limit_bytes=vmem_limit),
    )(qp, kp, vp, mask3)


# ----------------------------------------------------------------------------
# MultiHeadAttention forward (glue in plain JAX; hot paths in Pallas)
# ----------------------------------------------------------------------------
def init_params(key, inputs):
    ks = jax.random.split(key, 8)
    bound = 1.0 / math.sqrt(inputs)

    def lin(kw, kb):
        # stored directly as (Din, Dout)  (== torch weight.T)
        w = jax.random.uniform(kw, (inputs, inputs), jnp.float32, -bound, bound)
        b = jax.random.uniform(kb, (inputs,), jnp.float32, -bound, bound)
        return w, b

    return dict(q=lin(ks[0], ks[1]), k=lin(ks[2], ks[3]),
                v=lin(ks[4], ks[5]), o=lin(ks[6], ks[7]))


def multi_head_attention(params, q, k, v, mask, heads):
    B, Lq, D = q.shape
    Lk = k.shape[1]
    assert D % heads == 0

    wq, bq = params["q"]
    wk, bk = params["k"]
    wv, bv = params["v"]
    if (k is q) and (v is q):
        # Self-attention: fused QKV projection reads the input once.
        w = jnp.concatenate([wq, wk, wv], axis=1)
        b = jnp.concatenate([bq, bk, bv], axis=0)
        qkv = linear(q.reshape(B * Lq, D), w, b, out_dtype=jnp.bfloat16)
        qp, kp, vp = jnp.split(qkv, 3, axis=-1)
    else:
        qp = linear(q.reshape(B * Lq, D), wq, bq, out_dtype=jnp.bfloat16)
        kp = linear(k.reshape(B * Lk, D), wk, bk, out_dtype=jnp.bfloat16)
        vp = linear(v.reshape(B * Lk, D), wv, bv, out_dtype=jnp.bfloat16)
    qp = qp.reshape(B, Lq, D)
    kp = kp.reshape(B, Lk, D)
    vp = vp.reshape(B, Lk, D)

    # Mask -> compact int8; size-1 batch dim stays un-broadcast (index_map maps to 0).
    if mask.ndim == 4:
        mask = mask[:, 0]        # drop (size-1) head dim
    if mask.ndim == 2:
        mask = mask[None]
    mask3 = (mask != 0).astype(jnp.int8)
    mask3 = jnp.broadcast_to(mask3, (mask3.shape[0], Lq, Lk))

    ctx = attention(qp, kp, vp, mask3, heads)                 # (B, Lq, D) f32
    out = linear(ctx.reshape(B * Lq, D), *params["o"])        # f32 output projection
    # a_dropout / f_dropout are None in the module -> Identity
    return out.reshape(B, Lq, D)


# ----------------------------------------------------------------------------
# Pure-JAX reference (sort-based exact entmax15, f32 everywhere) for verification
# ----------------------------------------------------------------------------
def _entmax15_ref(x):
    x = x - jnp.max(x, axis=-1, keepdims=True)
    x = x / 2.0
    xs = jnp.sort(x, axis=-1)[..., ::-1]
    rho = jnp.arange(1, x.shape[-1] + 1, dtype=jnp.float32)
    mean = jnp.cumsum(xs, axis=-1) / rho
    mean_sq = jnp.cumsum(xs * xs, axis=-1) / rho
    ss = rho * (mean_sq - mean * mean)
    delta = (1.0 - ss) / rho
    tau = mean - jnp.sqrt(jnp.clip(delta, 0.0))
    support = jnp.sum((tau <= xs).astype(jnp.int32), axis=-1, keepdims=True)
    tau_star = jnp.take_along_axis(tau, support - 1, axis=-1)
    return jnp.clip(x - tau_star, 0.0) ** 2


def _mha_ref(params, q, k, v, mask, heads):
    B, Lq, D = q.shape
    Lk = k.shape[1]
    hd = D // heads
    qp = (q @ params["q"][0] + params["q"][1]).reshape(B, Lq, heads, hd)
    kp = (k @ params["k"][0] + params["k"][1]).reshape(B, Lk, heads, hd)
    vp = (v @ params["v"][0] + params["v"][1]).reshape(B, Lk, heads, hd)
    qh, kh, vh = (jnp.transpose(t, (0, 2, 1, 3)) for t in (qp, kp, vp))
    scores = jnp.einsum("bhqd,bhkd->bhqk", qh, kh) / math.sqrt(hd)
    scores = jnp.where(mask == 0, -1e12, scores)
    attn = _entmax15_ref(scores)
    out = jnp.einsum("bhqk,bhkd->bhqd", attn, vh)
    out = jnp.transpose(out, (0, 2, 1, 3)).reshape(B, Lq, D)
    return out @ params["o"][0] + params["o"][1]


if __name__ == "__main__":
    B, L, D, H = 2, 8, 32, 4

    key = jax.random.PRNGKey(0)
    k_q, k_k, k_v, k_p = jax.random.split(key, 4)
    q = jax.random.normal(k_q, (B, L, D), jnp.float32)
    k = jax.random.normal(k_k, (B, L, D), jnp.float32)
    v = jax.random.normal(k_v, (B, L, D), jnp.float32)
    # causal mask, batch dim 1 -> broadcast over batch & heads without materializing
    mask = jnp.tril(jnp.ones((L, L), jnp.float32))[None, None]      # (1, 1, L, L)

    params = init_params(k_p, D)

    # Cross-attention style call (distinct q/k/v).
    out = jax.block_until_ready(multi_head_attention(params, q, k, v, mask, H))
    ref = _mha_ref(params, q, k, v, mask, H)
    assert out.shape == (B, L, D)
    assert bool(jnp.all(jnp.isfinite(out)))
    err = float(jnp.max(jnp.abs(out - ref)))
    assert err < 5e-2, err          # bf16 matmuls vs f32 reference

    # Self-attention call exercises the fused-QKV projection path.
    out_sa = jax.block_until_ready(multi_head_attention(params, q, q, q, mask, H))
    ref_sa = _mha_ref(params, q, q, q, mask, H)
    err_sa = float(jnp.max(jnp.abs(out_sa - ref_sa)))
    assert err_sa < 5e-2, err_sa

    print("KERNEL_OK")
</pallas_src>

<mosaic_0001>
module attributes {stable_mosaic.version = 11 : i64} {
  func.func @_linear_kernel(%arg0: i32, %arg1: i32, %arg2: memref<16x32xf32, #tpu.memory_space<vmem>>, %arg3: memref<32x32xf32, #tpu.memory_space<vmem>>, %arg4: memref<1x32xf32, #tpu.memory_space<vmem>>, %arg5: memref<16x32xbf16, #tpu.memory_space<vmem>>) attributes {dimension_semantics = [#tpu.dimension_semantics<parallel>, #tpu.dimension_semantics<parallel>], iteration_bounds = array<i64: 1, 1>, scalar_prefetch = 0 : i64, scratch_operands = 0 : i64, tpu.core_type = #tpu.core_type<tc>, window_params = [{transform_indices = @transform_0, window_bounds = array<i64: 16, 32>}, {transform_indices = @transform_1, window_bounds = array<i64: 32, 32>}, {transform_indices = @transform_2, window_bounds = array<i64: 1, 32>}, {transform_indices = @transform_3, window_bounds = array<i64: 16, 32>}]} {
    %c0 = arith.constant 0 : index
    %c0_0 = arith.constant 0 : index
    %0 = vector.load %arg2[%c0, %c0_0] : memref<16x32xf32, #tpu.memory_space<vmem>>, vector<16x32xf32>
    %c0_1 = arith.constant 0 : index
    %c0_2 = arith.constant 0 : index
    %1 = vector.load %arg3[%c0_1, %c0_2] : memref<32x32xf32, #tpu.memory_space<vmem>>, vector<32x32xf32>
    %cst = arith.constant dense<0.000000e+00> : vector<16x32xf32>
    %2 = tpu.matmul %0, %1, %cst {dimension_numbers = #tpu.dot_dimension_numbers<[1], [0], [0], [1], [0, 0, 1, 1], [], []>} : vector<16x32xf32>, vector<32x32xf32>, vector<16x32xf32> -> vector<16x32xf32>
    %c0_3 = arith.constant 0 : index
    %c0_4 = arith.constant 0 : index
    %3 = vector.load %arg4[%c0_3, %c0_4] : memref<1x32xf32, #tpu.memory_space<vmem>>, vector<1x32xf32>
    %4 = vector.broadcast %3 : vector<1x32xf32> to vector<16x32xf32>
    %5 = arith.addf %2, %4 : vector<16x32xf32>
    %6 = arith.truncf %5 : vector<16x32xf32> to vector<16x32xbf16>
    %c0_5 = arith.constant 0 : index
    %c0_6 = arith.constant 0 : index
    %7 = vector.load %arg5[%c0_5, %c0_6] : memref<16x32xbf16, #tpu.memory_space<vmem>>, vector<16x32xbf16>
    tpu.vector_store %arg5[%c0_5, %c0_6], %6 {strides = array<i32>} : memref<16x32xbf16, #tpu.memory_space<vmem>>, vector<16x32xbf16>,
    return
  }
  func.func @transform_0(%arg0: i32, %arg1: i32) -> (i32, i32) {
    %c0_i32 = arith.constant 0 : i32
    %c0_i32_0 = arith.constant 0 : i32
    return %arg0, %c0_i32 : i32, i32
  }
  func.func @transform_1(%arg0: i32, %arg1: i32) -> (i32, i32) {
    %c0_i32 = arith.constant 0 : i32
    %c0_i32_0 = arith.constant 0 : i32
    return %c0_i32, %arg1 : i32, i32
  }
  func.func @transform_2(%arg0: i32, %arg1: i32) -> (i32, i32) {
    %c0_i32 = arith.constant 0 : i32
    %c0_i32_0 = arith.constant 0 : i32
    return %c0_i32, %arg1 : i32, i32
  }
  func.func @transform_3(%arg0: i32, %arg1: i32) -> (i32, i32) {
    %c0_i32 = arith.constant 0 : i32
    return %arg0, %arg1 : i32, i32
  }
}

</mosaic_0001>

<llo_original>
// kernel: tpu_custom_call.1
$region0: #{tpu_custom_call.1}
  #allocation0 [shape = 'u32[]', space=smem, size = 0x4, offset = 0x4, fixed_abs, tag = 'smem constant byte address 0x4 - core index']
  #allocation1 [shape = 'u32[144,128]{1,0:T(1,128)}', space=vmem, size = 0x12000, scoped, tag = 'internal scratch']
  %s0 = inlined_call_operand.hbm [shape: f32[16,32], index: 0, kind: input, shape index: {}]
  %s1 = inlined_call_operand.hbm [shape: f32[32,32], index: 1, kind: input, shape index: {}]
  %s2 = inlined_call_operand.vmem [shape: f32[1,32], index: 2, kind: input, shape index: {}]
  %s3 = inlined_call_operand.hbm [shape: bf16[16,32], index: 3, kind: output, shape index: {}]
  %s4 = sld [smem:[#allocation0]]
  $region30: #{tpu_custom_call.1} parent=0
    _
  %s6 = ssub.s32 1, %s4
  %s7 = scalar_select 0, %s6, %s4
  $region1: #{tpu_custom_call.1} parent=0
    #allocation2 [shape = 'u8[8192]{0}', space=vmem, size = 0x2000, scoped, tag = 'input window, operand 0, single buffered']
    #allocation3 [shape = 's32[1]{0}', space=sflag, size = 0x4, scoped, tag = 'scoped memory for tpu_custom_call.1']
    #allocation4 [shape = 's32[1]{0}', space=sflag, size = 0x4, scoped, tag = 'scoped memory for tpu_custom_call.1']
    #allocation5 [shape = 'u8[16384]{0}', space=vmem, size = 0x4000, scoped, tag = 'input window, operand 1, single buffered']
    #allocation6 [shape = 's32[1]{0}', space=sflag, size = 0x4, scoped, tag = 'scoped memory for tpu_custom_call.1']
    #allocation7 [shape = 'u8[4096]{0}', space=vmem, size = 0x1000, scoped, tag = 'output window, operand 0, single buffered']
    %8 = vsyncpa [#allocation3], 0
    %9 = vsyncpa [#allocation6], 0
    %10 = vsyncpa [#allocation4], 0
    // Predicated region
    $region2: #{tpu_custom_call.1} parent=1 // pred_check
      _
    $region3: #{tpu_custom_call.1} parent=1 // pred_check_branch
      %12 = sbr.rel (0) target = $region5
    $region4: #{tpu_custom_call.1} parent=1 // pred_region
      %s14 = ssub.s32 256, 256
      %15 = vsyncadd [#allocation3], %s14
      %s16 = sshll.u32 [#allocation2], 4
      %s17 = int_to_ptr.vmem [resolvable:$true] %s16
      %22 = dma.hbm_to_vmem [thread:$0]  %s0, 256, %s17, [#allocation3], 128, 128, 8
    $region5: #{tpu_custom_call.1} parent=1 // pred_fallthru
      _
    // Predicated region
    $region6: #{tpu_custom_call.1} parent=1 // pred_check
      _
    $region7: #{tpu_custom_call.1} parent=1 // pred_check_branch
      %24 = sbr.rel (0) target = $region9
    $region8: #{tpu_custom_call.1} parent=1 // pred_region
      %s26 = ssub.s32 512, 512
      %27 = vsyncadd [#allocation6], %s26
      %s28 = sshll.u32 [#allocation5], 4
      %s29 = int_to_ptr.vmem [resolvable:$true] %s28
      %34 = dma.hbm_to_vmem [thread:$0]  %s1, 512, %s29, [#allocation6], 128, 128, 8
    $region9: #{tpu_custom_call.1} parent=1 // pred_fallthru
      _
    // Predicated region
    $region10: #{tpu_custom_call.1} parent=1 // pred_check
      _
    $region11: #{tpu_custom_call.1} parent=1 // pred_check_branch
      %36 = sbr.rel (0) target = $region13
    $region12: #{tpu_custom_call.1} parent=1 // pred_region
      _
    $region13: #{tpu_custom_call.1} parent=1 // pred_fallthru
      _
    // Predicated region
    $region14: #{tpu_custom_call.1} parent=1 // pred_check
      _
    $region15: #{tpu_custom_call.1} parent=1 // pred_check_branch
      %38 = sbr.rel (0) target = $region17
    $region16: #{tpu_custom_call.1} parent=1 // pred_region
      %39 = dma.done [#allocation3], 256
    $region17: #{tpu_custom_call.1} parent=1 // pred_fallthru
      _
    // Predicated region
    $region18: #{tpu_custom_call.1} parent=1 // pred_check
      _
    $region19: #{tpu_custom_call.1} parent=1 // pred_check_branch
      %41 = sbr.rel (0) target = $region21
    $region20: #{tpu_custom_call.1} parent=1 // pred_region
      %42 = dma.done [#allocation6], 512
    $region21: #{tpu_custom_call.1} parent=1 // pred_fallthru
      _
    %v43 = vld [vmem:[#allocation2] sm:$0xff]
    %v44 = vld [vmem:[#allocation2 + $0x8] sm:$0xff]
    %v45 = vld [vmem:[#allocation5] sm:$0xff]
    %v46 = vld [vmem:[#allocation5 + $0x8] sm:$0xff]
    %v47 = vld [vmem:[#allocation5 + $0x10] sm:$0xff]
    %v48 = vld [vmem:[#allocation5 + $0x18] sm:$0xff]
    %v49 = vld [vmem:[%s2] sm:$0x1]
    %v51 = vlaneseq
    %v52 = vshrl.u32 %v51, 7
    %v53 = vsub.s32 0, %v52
    %v54 = vrot.slane %v49, %v53
    %vm56 = vcmask 261120
    %v58 = vsel %vm56, %v43, 0
    %v61 = vsel %vm56, %v44, 0
    %63 = vmatprep.subr.mxu0 0.0
    %64 = vmatpush1.msra.mxu0 0.0
    %65 = vmatprep.subr.mxu0 0.0
    %66 = vmatpush1.msra.mxu0 0.0
    %67 = vmatprep.subr.mxu0 0.0
    %68 = vmatpush1.msra.mxu0 0.0
    %69 = vmatprep.subr.mxu0 0.0
    %70 = vmatpush1.msra.mxu0 0.0
    %71 = vmatprep.subr.mxu0 0.0
    %72 = vmatpush1.msra.mxu0 0.0
    %73 = vmatprep.subr.mxu0 0.0
    %74 = vmatpush1.msra.mxu0 0.0
    %75 = vmatprep.subr.mxu0 0.0
    %76 = vmatpush1.msra.mxu0 0.0
    %77 = vmatprep.subr.mxu0 0.0
    %78 = vmatpush1.msra.mxu0 0.0
    %79 = vmatprep.subr.mxu0 0.0
    %80 = vmatpush1.msra.mxu0 0.0
    %81 = vmatprep.subr.mxu0 0.0
    %82 = vmatpush1.msra.mxu0 0.0
    %83 = vmatprep.subr.mxu0 0.0
    %84 = vmatpush1.msra.mxu0 0.0
    %85 = vmatprep.subr.mxu0 0.0
    %86 = vmatpush1.msra.mxu0 0.0
    %87 = vmatprep.subr.mxu0 0.0
    %88 = vmatpush1.msra.mxu0 %v48
    %89 = vmatprep.subr.mxu0 0.0
    %90 = vmatpush1.msra.mxu0 %v47
    %91 = vmatprep.subr.mxu0 0.0
    %92 = vmatpush1.msra.mxu0 %v46
    %93 = vmatprep.subr.mxu0 0.0
    %94 = vmatpush1.msra.mxu0 %v45
    %95 = vmatprep.subr.mxu0 0.0
    %96 = vmatpush2.msra.mxu0 0.0
    %97 = vmatprep.subr.mxu0 0.0
    %98 = vmatpush2.msra.mxu0 0.0
    %99 = vmatprep.subr.mxu0 0.0
    %100 = vmatpush2.msra.mxu0 0.0
    %101 = vmatprep.subr.mxu0 0.0
    %102 = vmatpush2.msra.mxu0 0.0
    %103 = vmatprep.subr.mxu0 0.0
    %104 = vmatpush2.msra.mxu0 0.0
    %105 = vmatprep.subr.mxu0 0.0
    %106 = vmatpush2.msra.mxu0 0.0
    %107 = vmatprep.subr.mxu0 0.0
    %108 = vmatpush2.msra.mxu0 0.0
    %109 = vmatprep.subr.mxu0 0.0
    %110 = vmatpush2.msra.mxu0 0.0
    %111 = vmatprep.subr.mxu0 0.0
    %112 = vmatpush2.msra.mxu0 0.0
    %113 = vmatprep.subr.mxu0 0.0
    %114 = vmatpush2.msra.mxu0 0.0
    %115 = vmatprep.subr.mxu0 0.0
    %116 = vmatpush2.msra.mxu0 0.0
    %117 = vmatprep.subr.mxu0 0.0
    %118 = vmatpush2.msra.mxu0 0.0
    %119 = vmatprep.subr.mxu0 0.0
    %120 = vmatpush2.msra.mxu0 0.0
    %121 = vmatprep.subr.mxu0 0.0
    %122 = vmatpush2.msra.mxu0 0.0
    %123 = vmatprep.subr.mxu0 0.0
    %124 = vmatpush2.msra.mxu0 0.0
    %125 = vmatprep.subr.mxu0 0.0
    %126 = vmatpush2.msra.mxu0 0.0
    %127 = vmatprep.mubr.f32.mxu0 0.0
    %128 = vmatmul.mubr.f32.gmra.mxu0 %v58
    %v129 = vpop.f32.mrf.mxu0
    %v130 = vadd.f32 %v54, %v129
    %v131 = vpop.f32.mrf.mxu0
    %132 = vmatprep.mubr.f32.mxu0 0.0
    %133 = vmatmul.mubr.f32.gmra.mxu0 %v61
    %v134 = vpop.f32.mrf.mxu0
    %v135 = vadd.f32 %v54, %v134
    %v136 = vpop.f32.mrf.mxu0
    %137 = vdwg.mxu0
    %v138 = vpack.c.bf16 %v135, %v130
    %v140 = vunpack.c.l.b16 %v138
    %v141 = vunpack.c.h.b16 %v138
    %v142 = vpack.c.b16 %v140, %v140
    %v143 = vpack.c.b16 %v141, %v141
    %vm146 = vcmask 257024
    %147 = vst.msk [vmem:[#allocation7] sm:$0xf] %vm146, %v142
    %148 = vst.msk [vmem:[#allocation7 + $0x4] sm:$0xf] %vm146, %v143
    // Predicated region
    $region22: #{tpu_custom_call.1} parent=1 // pred_check
      _
    $region23: #{tpu_custom_call.1} parent=1 // pred_check_branch
      %150 = sbr.rel (0) target = $region25
    $region24: #{tpu_custom_call.1} parent=1 // pred_region
      %s152 = ssub.s32 128, 128
      %153 = vsyncadd [#allocation4], %s152
      %s154 = sshll.u32 [#allocation7], 4
      %s155 = int_to_ptr.vmem [resolvable:$true] %s154
      %160 = dma.vmem_to_hbm [thread:$0]  %s155, 128, %s3, [#allocation4], 64, 64, 4
    $region25: #{tpu_custom_call.1} parent=1 // pred_fallthru
      _
    // Predicated region
    $region26: #{tpu_custom_call.1} parent=1 // pred_check
      _
    $region27: #{tpu_custom_call.1} parent=1 // pred_check_branch
      %162 = sbr.rel (0) target = $region29
    $region28: #{tpu_custom_call.1} parent=1 // pred_region
      %163 = dma.done [#allocation4], 128
    $region29: #{tpu_custom_call.1} parent=1 // pred_fallthru
      _
    %164 = vsyncpa [#allocation3], 1
    %165 = vsyncpa [#allocation6], 1
    %166 = vsyncpa [#allocation4], 1

</llo_original>
